<compile_context>
chip_gen: v5e
topology: v5e:2x2
jax: 0.10.0
libtpu: 0.0.40
codegen_flags: <defaults>
</compile_context>

<pallas_src>
import functools

import jax
import jax.numpy as jnp
from jax import lax
from jax.experimental import pallas as pl
from jax.experimental.pallas import tpu as pltpu


# ---------------------------------------------------------------------------
# Fused kernel: backbone (2x conv3x3+ReLU) -> mid (1x1+ReLU) -> head (1x1)
# Everything channel-major: activations are (C, HW) slabs, HW on the lane axis.
# ---------------------------------------------------------------------------
def seg_fused_kernel(x_ref, wb_ref, mask_ref, o_ref, *, H, W, C1, C2, NC):
    """Whole SegModel forward for one batch image.

    x_ref    : (1, CinP, HW)          channel-major input (Cin padded to 8)
    wb_ref   : (C1+2*C2+NC, BC+1)     packed weights; column BC holds biases
    mask_ref : (9*CM, HW)             per-tap zero-pad masks, replicated CM x
    o_ref    : (1, NC, HW)            lane-dense NCHW logits slab
    """
    HW = H * W
    CinP = x_ref.shape[1]
    K1 = 9 * CinP
    K2 = 9 * C1
    BC = ((K2 + 127) // 128) * 128        # bias column (lane-tile aligned)
    CM = mask_ref.shape[0] // 9           # mask replication factor (>= CinP, C1)

    x = x_ref[0]                          # (CinP, HW)

    def im2col(a):
        """9 rolled copies of a (C, HW) slab -> (9*C, HW), tap-major.

        Each tap is a lane roll on the flat HW axis; lanes that wrap across a
        row edge or the image edge are zeroed by the precomputed boundary
        mask, reproducing SAME zero padding.  All pieces are 8/16 sublanes, so
        the sublane concatenation is tile-aligned.
        """
        C = a.shape[0]
        pieces = []
        t = 0
        for oy in (-1, 0, 1):
            for ox in (-1, 0, 1):
                off = oy * W + ox
                s = a if off == 0 else pltpu.roll(a, shift=(-off) % HW, axis=1)
                pieces.append(s * mask_ref[t * CM:t * CM + C, :])
                t += 1
        return jnp.concatenate(pieces, axis=0)

    r1, r2, rm, rh = 0, C1, C1 + C2, C1 + 2 * C2

    # ---- backbone conv1 3x3 + ReLU: (C1, 9*CinP) @ (9*CinP, HW) ------------
    p1 = im2col(x)                                               # (K1, HW)
    h1 = jnp.dot(wb_ref[r1:r1 + C1, 0:K1], p1,
                 preferred_element_type=jnp.float32)
    h1 = jnp.maximum(h1 + wb_ref[r1:r1 + C1, BC:BC + 1], 0.0)    # (C1, HW)

    # ---- backbone conv2 3x3 + ReLU: (C2, 9*C1) @ (9*C1, HW) ---------------
    p2 = im2col(h1)                                              # (K2, HW)
    h2 = jnp.dot(wb_ref[r2:r2 + C2, 0:K2], p2,
                 preferred_element_type=jnp.float32)
    h2 = jnp.maximum(h2 + wb_ref[r2:r2 + C2, BC:BC + 1], 0.0)    # (C2, HW)

    # ---- mid: 1x1 conv + ReLU ---------------------------------------------
    m = jnp.dot(wb_ref[rm:rm + C2, 0:C2], h2,
                preferred_element_type=jnp.float32)
    m = jnp.maximum(m + wb_ref[rm:rm + C2, BC:BC + 1], 0.0)      # (C2, HW)

    # ---- head: 1x1 conv (logits), lane-dense NCHW store --------------------
    y = jnp.dot(wb_ref[rh:rh + NC, 0:C2], m,
                preferred_element_type=jnp.float32)
    y = y + wb_ref[rh:rh + NC, BC:BC + 1]                        # (NC, HW)
    o_ref[0] = y.astype(o_ref.dtype)


# ---------------------------------------------------------------------------
# Parameters
# ---------------------------------------------------------------------------
def init_params(key, cin=4, c1=16, c2=32, num_classes=8):
    ks = jax.random.split(key, 8)
    scale = 0.1
    return {
        "bb_w1": scale * jax.random.normal(ks[0], (3, 3, cin, c1), jnp.float32),
        "bb_b1": scale * jax.random.normal(ks[1], (c1,), jnp.float32),
        "bb_w2": scale * jax.random.normal(ks[2], (3, 3, c1, c2), jnp.float32),
        "bb_b2": scale * jax.random.normal(ks[3], (c2,), jnp.float32),
        "mid_w": scale * jax.random.normal(ks[4], (c2, c2), jnp.float32),
        "mid_b": scale * jax.random.normal(ks[5], (c2,), jnp.float32),
        "head_w": scale * jax.random.normal(ks[6], (c2, num_classes), jnp.float32),
        "head_b": scale * jax.random.normal(ks[7], (num_classes,), jnp.float32),
    }


# ---------------------------------------------------------------------------
# Wrapper: weight/mask packing + single pallas_call
# ---------------------------------------------------------------------------
@jax.jit
def seg_model_forward(params, x_nchw):
    N, Cin, H, W = x_nchw.shape
    C1 = params["bb_b1"].shape[0]
    C2 = params["bb_b2"].shape[0]
    NC = params["head_b"].shape[0]
    HW = H * W

    CinP = ((Cin + 7) // 8) * 8           # pad input channels to a sublane tile
    CM = max(CinP, C1)                    # mask replication factor
    K2 = 9 * C1
    BC = ((K2 + 127) // 128) * 128        # bias column index (lane aligned)
    R = C1 + 2 * C2 + NC

    # NCHW is already channel-major: free reshape + tiny channel pad.
    x = jnp.pad(x_nchw.reshape(N, Cin, HW), ((0, 0), (0, CinP - Cin), (0, 0)))

    # ---- pack all weights + biases into ONE slab (single DMA) -------------
    # Each conv weight is im2col-flattened tap-major and transposed so the
    # kernel computes (Cout, K) @ (K, HW) directly.
    w1p = jnp.pad(params["bb_w1"],
                  ((0, 0), (0, 0), (0, CinP - Cin), (0, 0)))      # (3,3,CinP,C1)
    packs = [
        (w1p.reshape(9 * CinP, C1).T, params["bb_b1"]),           # (C1, 9*CinP)
        (params["bb_w2"].reshape(9 * C1, C2).T, params["bb_b2"]), # (C2, 9*C1)
        (params["mid_w"].T, params["mid_b"]),                     # (C2, C2)
        (params["head_w"].T, params["head_b"]),                   # (NC, C2)
    ]
    wb = jnp.zeros((R, BC + 1), jnp.float32)
    r = 0
    for mat, bias in packs:
        rr, cc = mat.shape
        wb = wb.at[r:r + rr, 0:cc].set(mat)
        wb = wb.at[r:r + rr, BC].set(bias)
        r += rr

    # ---- per-tap boundary masks for SAME zero padding (shape-only const) ---
    ys = jnp.arange(H)[:, None]
    xs = jnp.arange(W)[None, :]
    mask_rows = []
    for oy in (-1, 0, 1):
        for ox in (-1, 0, 1):
            valid = ((ys + oy >= 0) & (ys + oy < H) &
                     (xs + ox >= 0) & (xs + ox < W))              # (H, W)
            mask_rows.append(jnp.broadcast_to(valid.reshape(1, HW), (CM, HW)))
    masks = jnp.concatenate(mask_rows, axis=0).astype(jnp.float32)  # (9*CM, HW)

    kernel = functools.partial(seg_fused_kernel, H=H, W=W, C1=C1, C2=C2, NC=NC)
    out = pl.pallas_call(
        kernel,
        out_shape=jax.ShapeDtypeStruct((N, NC, HW), x_nchw.dtype),
        grid_spec=pltpu.PrefetchScalarGridSpec(
            num_scalar_prefetch=0,
            grid=(N,),
            in_specs=[
                pl.BlockSpec((1, CinP, HW), lambda n: (n, 0, 0)),
                pl.BlockSpec((R, BC + 1), lambda n: (0, 0)),
                pl.BlockSpec((9 * CM, HW), lambda n: (0, 0)),
            ],
            out_specs=pl.BlockSpec((1, NC, HW), lambda n: (n, 0, 0)),
        ),
        compiler_params=pltpu.CompilerParams(
            dimension_semantics=("parallel",)),   # 2 images -> 2 TCs on v7x
    )(x, wb, masks)

    # Output is already channel-major (NCHW); contiguous reshape is free.
    return out.reshape(N, NC, H, W)


# ---------------------------------------------------------------------------
# Pure-JAX reference for validation
# ---------------------------------------------------------------------------
def reference_forward(params, x_nchw):
    x = jnp.transpose(x_nchw, (0, 2, 3, 1))

    def conv(x, w, b, relu):
        y = lax.conv_general_dilated(
            x, w, window_strides=(1, 1), padding="SAME",
            dimension_numbers=("NHWC", "HWIO", "NHWC")) + b
        return jnp.maximum(y, 0.0) if relu else y

    f = conv(x, params["bb_w1"], params["bb_b1"], True)
    f = conv(f, params["bb_w2"], params["bb_b2"], True)
    f = jnp.maximum(jnp.einsum("nhwc,cd->nhwd", f, params["mid_w"])
                    + params["mid_b"], 0.0)
    out = jnp.einsum("nhwc,cd->nhwd", f, params["head_w"]) + params["head_b"]
    return jnp.transpose(out, (0, 3, 1, 2))


if __name__ == "__main__":
    key = jax.random.PRNGKey(0)
    pkey, xkey = jax.random.split(key)
    params = init_params(pkey, cin=4, c1=16, c2=32, num_classes=8)
    x = jax.random.normal(xkey, (2, 4, 16, 16), jnp.float32)  # NCHW

    out = seg_model_forward(params, x)
    out = jax.block_until_ready(out)

    ref = reference_forward(params, x)
    assert out.shape == (2, 8, 16, 16), out.shape
    assert jnp.allclose(out, ref, atol=1e-3, rtol=1e-3), \
        float(jnp.max(jnp.abs(out - ref)))
    print("KERNEL_OK")
</pallas_src>

<mosaic_0001>
module attributes {stable_mosaic.version = 11 : i64} {
  func.func @seg_fused_kernel(%arg0: i32, %arg1: memref<1x8x256xf32, #tpu.memory_space<vmem>>, %arg2: memref<88x257xf32, #tpu.memory_space<vmem>>, %arg3: memref<144x256xf32, #tpu.memory_space<vmem>>, %arg4: memref<1x8x256xf32, #tpu.memory_space<vmem>>) attributes {dimension_semantics = [#tpu.dimension_semantics<parallel>], iteration_bounds = array<i64: 2>, scalar_prefetch = 0 : i64, scratch_operands = 0 : i64, tpu.core_type = #tpu.core_type<tc>, window_params = [{transform_indices = @transform_0, window_bounds = array<i64: 1, 8, 256>}, {pipeline_mode = #tpu.pipeline_mode<synchronous>, transform_indices = @transform_1, window_bounds = array<i64: 88, 257>}, {pipeline_mode = #tpu.pipeline_mode<synchronous>, transform_indices = @transform_2, window_bounds = array<i64: 144, 256>}, {transform_indices = @transform_3, window_bounds = array<i64: 1, 8, 256>}]} {
    %c0 = arith.constant 0 : index
    %c0_0 = arith.constant 0 : index
    %c0_1 = arith.constant 0 : index
    %0 = vector.load %arg1[%c0, %c0_0, %c0_1] : memref<1x8x256xf32, #tpu.memory_space<vmem>>, vector<1x8x256xf32>
    %1 = vector.shape_cast %0 : vector<1x8x256xf32> to vector<8x256xf32>
    %c17_i32 = arith.constant 17 : i32
    %2 = tpu.dynamic_rotate %1 by %c17_i32 dim 1 : vector<8x256xf32>, i32 -> vector<8x256xf32>
    %c0_2 = arith.constant 0 : index
    %c0_3 = arith.constant 0 : index
    %3 = vector.load %arg3[%c0_2, %c0_3] : memref<144x256xf32, #tpu.memory_space<vmem>>, vector<8x256xf32>
    %4 = arith.mulf %2, %3 : vector<8x256xf32>
    %c16_i32 = arith.constant 16 : i32
    %5 = tpu.dynamic_rotate %1 by %c16_i32 dim 1 : vector<8x256xf32>, i32 -> vector<8x256xf32>
    %c16 = arith.constant 16 : index
    %c0_4 = arith.constant 0 : index
    %6 = vector.load %arg3[%c16, %c0_4] : memref<144x256xf32, #tpu.memory_space<vmem>>, vector<8x256xf32>
    %7 = arith.mulf %5, %6 : vector<8x256xf32>
    %c15_i32 = arith.constant 15 : i32
    %8 = tpu.dynamic_rotate %1 by %c15_i32 dim 1 : vector<8x256xf32>, i32 -> vector<8x256xf32>
    %c32 = arith.constant 32 : index
    %c0_5 = arith.constant 0 : index
    %9 = vector.load %arg3[%c32, %c0_5] : memref<144x256xf32, #tpu.memory_space<vmem>>, vector<8x256xf32>
    %10 = arith.mulf %8, %9 : vector<8x256xf32>
    %c1_i32 = arith.constant 1 : i32
    %11 = tpu.dynamic_rotate %1 by %c1_i32 dim 1 : vector<8x256xf32>, i32 -> vector<8x256xf32>
    %c48 = arith.constant 48 : index
    %c0_6 = arith.constant 0 : index
    %12 = vector.load %arg3[%c48, %c0_6] : memref<144x256xf32, #tpu.memory_space<vmem>>, vector<8x256xf32>
    %13 = arith.mulf %11, %12 : vector<8x256xf32>
    %c64 = arith.constant 64 : index
    %c0_7 = arith.constant 0 : index
    %14 = vector.load %arg3[%c64, %c0_7] : memref<144x256xf32, #tpu.memory_space<vmem>>, vector<8x256xf32>
    %15 = arith.mulf %1, %14 : vector<8x256xf32>
    %c255_i32 = arith.constant 255 : i32
    %16 = tpu.dynamic_rotate %1 by %c255_i32 dim 1 : vector<8x256xf32>, i32 -> vector<8x256xf32>
    %c80 = arith.constant 80 : index
    %c0_8 = arith.constant 0 : index
    %17 = vector.load %arg3[%c80, %c0_8] : memref<144x256xf32, #tpu.memory_space<vmem>>, vector<8x256xf32>
    %18 = arith.mulf %16, %17 : vector<8x256xf32>
    %c241_i32 = arith.constant 241 : i32
    %19 = tpu.dynamic_rotate %1 by %c241_i32 dim 1 : vector<8x256xf32>, i32 -> vector<8x256xf32>
    %c96 = arith.constant 96 : index
    %c0_9 = arith.constant 0 : index
    %20 = vector.load %arg3[%c96, %c0_9] : memref<144x256xf32, #tpu.memory_space<vmem>>, vector<8x256xf32>
    %21 = arith.mulf %19, %20 : vector<8x256xf32>
    %c240_i32 = arith.constant 240 : i32
    %22 = tpu.dynamic_rotate %1 by %c240_i32 dim 1 : vector<8x256xf32>, i32 -> vector<8x256xf32>
    %c112 = arith.constant 112 : index
    %c0_10 = arith.constant 0 : index
    %23 = vector.load %arg3[%c112, %c0_10] : memref<144x256xf32, #tpu.memory_space<vmem>>, vector<8x256xf32>
    %24 = arith.mulf %22, %23 : vector<8x256xf32>
    %c239_i32 = arith.constant 239 : i32
    %25 = tpu.dynamic_rotate %1 by %c239_i32 dim 1 : vector<8x256xf32>, i32 -> vector<8x256xf32>
    %c128 = arith.constant 128 : index
    %c0_11 = arith.constant 0 : index
    %26 = vector.load %arg3[%c128, %c0_11] : memref<144x256xf32, #tpu.memory_space<vmem>>, vector<8x256xf32>
    %27 = arith.mulf %25, %26 : vector<8x256xf32>
    %28 = tpu.concatenate %4, %7, %10, %13, %15, %18, %21, %24, %27 in 0 : vector<8x256xf32>, vector<8x256xf32>, vector<8x256xf32>, vector<8x256xf32>, vector<8x256xf32>, vector<8x256xf32>, vector<8x256xf32>, vector<8x256xf32>, vector<8x256xf32> -> vector<72x256xf32>
    %c0_12 = arith.constant 0 : index
    %c0_13 = arith.constant 0 : index
    %29 = vector.load %arg2[%c0_12, %c0_13] : memref<88x257xf32, #tpu.memory_space<vmem>>, vector<16x72xf32>
    %cst = arith.constant dense<0.000000e+00> : vector<16x256xf32>
    %30 = tpu.matmul %29, %28, %cst {dimension_numbers = #tpu.dot_dimension_numbers<[1], [0], [0], [1], [0, 0, 1, 1], [], []>} : vector<16x72xf32>, vector<72x256xf32>, vector<16x256xf32> -> vector<16x256xf32>
    %c0_14 = arith.constant 0 : index
    %c256 = arith.constant 256 : index
    %31 = vector.load %arg2[%c0_14, %c256] : memref<88x257xf32, #tpu.memory_space<vmem>>, vector<16x1xf32>
    %32 = vector.broadcast %31 : vector<16x1xf32> to vector<16x256xf32>
    %33 = arith.addf %30, %32 : vector<16x256xf32>
    %cst_15 = arith.constant 0.000000e+00 : f32
    %34 = vector.broadcast %cst_15 : f32 to vector<16x256xf32>
    %35 = arith.maximumf %33, %34 : vector<16x256xf32>
    %c17_i32_16 = arith.constant 17 : i32
    %36 = tpu.dynamic_rotate %35 by %c17_i32_16 dim 1 : vector<16x256xf32>, i32 -> vector<16x256xf32>
    %c0_17 = arith.constant 0 : index
    %c0_18 = arith.constant 0 : index
    %37 = vector.load %arg3[%c0_17, %c0_18] : memref<144x256xf32, #tpu.memory_space<vmem>>, vector<16x256xf32>
    %38 = arith.mulf %36, %37 : vector<16x256xf32>
    %c16_i32_19 = arith.constant 16 : i32
    %39 = tpu.dynamic_rotate %35 by %c16_i32_19 dim 1 : vector<16x256xf32>, i32 -> vector<16x256xf32>
    %c16_20 = arith.constant 16 : index
    %c0_21 = arith.constant 0 : index
    %40 = vector.load %arg3[%c16_20, %c0_21] : memref<144x256xf32, #tpu.memory_space<vmem>>, vector<16x256xf32>
    %41 = arith.mulf %39, %40 : vector<16x256xf32>
    %c15_i32_22 = arith.constant 15 : i32
    %42 = tpu.dynamic_rotate %35 by %c15_i32_22 dim 1 : vector<16x256xf32>, i32 -> vector<16x256xf32>
    %c32_23 = arith.constant 32 : index
    %c0_24 = arith.constant 0 : index
    %43 = vector.load %arg3[%c32_23, %c0_24] : memref<144x256xf32, #tpu.memory_space<vmem>>, vector<16x256xf32>
    %44 = arith.mulf %42, %43 : vector<16x256xf32>
    %c1_i32_25 = arith.constant 1 : i32
    %45 = tpu.dynamic_rotate %35 by %c1_i32_25 dim 1 : vector<16x256xf32>, i32 -> vector<16x256xf32>
    %c48_26 = arith.constant 48 : index
    %c0_27 = arith.constant 0 : index
    %46 = vector.load %arg3[%c48_26, %c0_27] : memref<144x256xf32, #tpu.memory_space<vmem>>, vector<16x256xf32>
    %47 = arith.mulf %45, %46 : vector<16x256xf32>
    %c64_28 = arith.constant 64 : index
    %c0_29 = arith.constant 0 : index
    %48 = vector.load %arg3[%c64_28, %c0_29] : memref<144x256xf32, #tpu.memory_space<vmem>>, vector<16x256xf32>
    %49 = arith.mulf %35, %48 : vector<16x256xf32>
    %c255_i32_30 = arith.constant 255 : i32
    %50 = tpu.dynamic_rotate %35 by %c255_i32_30 dim 1 : vector<16x256xf32>, i32 -> vector<16x256xf32>
    %c80_31 = arith.constant 80 : index
    %c0_32 = arith.constant 0 : index
    %51 = vector.load %arg3[%c80_31, %c0_32] : memref<144x256xf32, #tpu.memory_space<vmem>>, vector<16x256xf32>
    %52 = arith.mulf %50, %51 : vector<16x256xf32>
    %c241_i32_33 = arith.constant 241 : i32
    %53 = tpu.dynamic_rotate %35 by %c241_i32_33 dim 1 : vector<16x256xf32>, i32 -> vector<16x256xf32>
    %c96_34 = arith.constant 96 : index
    %c0_35 = arith.constant 0 : index
    %54 = vector.load %arg3[%c96_34, %c0_35] : memref<144x256xf32, #tpu.memory_space<vmem>>, vector<16x256xf32>
    %55 = arith.mulf %53, %54 : vector<16x256xf32>
    %c240_i32_36 = arith.constant 240 : i32
    %56 = tpu.dynamic_rotate %35 by %c240_i32_36 dim 1 : vector<16x256xf32>, i32 -> vector<16x256xf32>
    %c112_37 = arith.constant 112 : index
    %c0_38 = arith.constant 0 : index
    %57 = vector.load %arg3[%c112_37, %c0_38] : memref<144x256xf32, #tpu.memory_space<vmem>>, vector<16x256xf32>
    %58 = arith.mulf %56, %57 : vector<16x256xf32>
    %c239_i32_39 = arith.constant 239 : i32
    %59 = tpu.dynamic_rotate %35 by %c239_i32_39 dim 1 : vector<16x256xf32>, i32 -> vector<16x256xf32>
    %c128_40 = arith.constant 128 : index
    %c0_41 = arith.constant 0 : index
    %60 = vector.load %arg3[%c128_40, %c0_41] : memref<144x256xf32, #tpu.memory_space<vmem>>, vector<16x256xf32>
    %61 = arith.mulf %59, %60 : vector<16x256xf32>
    %62 = tpu.concatenate %38, %41, %44, %47, %49, %52, %55, %58, %61 in 0 : vector<16x256xf32>, vector<16x256xf32>, vector<16x256xf32>, vector<16x256xf32>, vector<16x256xf32>, vector<16x256xf32>, vector<16x256xf32>, vector<16x256xf32>, vector<16x256xf32> -> vector<144x256xf32>
    %c16_42 = arith.constant 16 : index
    %c0_43 = arith.constant 0 : index
    %63 = vector.load %arg2[%c16_42, %c0_43] : memref<88x257xf32, #tpu.memory_space<vmem>>, vector<32x144xf32>
    %cst_44 = arith.constant dense<0.000000e+00> : vector<32x256xf32>
    %64 = tpu.matmul %63, %62, %cst_44 {dimension_numbers = #tpu.dot_dimension_numbers<[1], [0], [0], [1], [0, 0, 1, 1], [], []>} : vector<32x144xf32>, vector<144x256xf32>, vector<32x256xf32> -> vector<32x256xf32>
    %c16_45 = arith.constant 16 : index
    %c256_46 = arith.constant 256 : index
    %65 = vector.load %arg2[%c16_45, %c256_46] : memref<88x257xf32, #tpu.memory_space<vmem>>, vector<32x1xf32>
    %66 = vector.broadcast %65 : vector<32x1xf32> to vector<32x256xf32>
    %67 = arith.addf %64, %66 : vector<32x256xf32>
    %cst_47 = arith.constant 0.000000e+00 : f32
    %68 = vector.broadcast %cst_47 : f32 to vector<32x256xf32>
    %69 = arith.maximumf %67, %68 : vector<32x256xf32>
    %c48_48 = arith.constant 48 : index
    %c0_49 = arith.constant 0 : index
    %70 = vector.load %arg2[%c48_48, %c0_49] : memref<88x257xf32, #tpu.memory_space<vmem>>, vector<32x32xf32>
    %cst_50 = arith.constant dense<0.000000e+00> : vector<32x256xf32>
    %71 = tpu.matmul %70, %69, %cst_50 {dimension_numbers = #tpu.dot_dimension_numbers<[1], [0], [0], [1], [0, 0, 1, 1], [], []>} : vector<32x32xf32>, vector<32x256xf32>, vector<32x256xf32> -> vector<32x256xf32>
    %c48_51 = arith.constant 48 : index
    %c256_52 = arith.constant 256 : index
    %72 = vector.load %arg2[%c48_51, %c256_52] : memref<88x257xf32, #tpu.memory_space<vmem>>, vector<32x1xf32>
    %73 = vector.broadcast %72 : vector<32x1xf32> to vector<32x256xf32>
    %74 = arith.addf %71, %73 : vector<32x256xf32>
    %cst_53 = arith.constant 0.000000e+00 : f32
    %75 = vector.broadcast %cst_53 : f32 to vector<32x256xf32>
    %76 = arith.maximumf %74, %75 : vector<32x256xf32>
    %c80_54 = arith.constant 80 : index
    %c0_55 = arith.constant 0 : index
    %77 = vector.load %arg2[%c80_54, %c0_55] : memref<88x257xf32, #tpu.memory_space<vmem>>, vector<8x32xf32>
    %cst_56 = arith.constant dense<0.000000e+00> : vector<8x256xf32>
    %78 = tpu.matmul %77, %76, %cst_56 {dimension_numbers = #tpu.dot_dimension_numbers<[1], [0], [0], [1], [0, 0, 1, 1], [], []>} : vector<8x32xf32>, vector<32x256xf32>, vector<8x256xf32> -> vector<8x256xf32>
    %c80_57 = arith.constant 80 : index
    %c256_58 = arith.constant 256 : index
    %79 = vector.load %arg2[%c80_57, %c256_58] : memref<88x257xf32, #tpu.memory_space<vmem>>, vector<8x1xf32>
    %80 = vector.broadcast %79 : vector<8x1xf32> to vector<8x256xf32>
    %81 = arith.addf %78, %80 : vector<8x256xf32>
    %c0_59 = arith.constant 0 : index
    %c0_60 = arith.constant 0 : index
    %c0_61 = arith.constant 0 : index
    %82 = vector.load %arg4[%c0_59, %c0_60, %c0_61] : memref<1x8x256xf32, #tpu.memory_space<vmem>>, vector<1x8x256xf32>
    %83 = vector.shape_cast %82 : vector<1x8x256xf32> to vector<8x256xf32>
    %84 = vector.shape_cast %81 : vector<8x256xf32> to vector<1x8x256xf32>
    tpu.vector_store %arg4[%c0_59, %c0_60, %c0_61], %84 {strides = array<i32>} : memref<1x8x256xf32, #tpu.memory_space<vmem>>, vector<1x8x256xf32>,
    return
  }
  func.func @transform_0(%arg0: i32) -> (i32, i32, i32) {
    %c0_i32 = arith.constant 0 : i32
    %c0_i32_0 = arith.constant 0 : i32
    %c0_i32_1 = arith.constant 0 : i32
    return %arg0, %c0_i32, %c0_i32_0 : i32, i32, i32
  }
  func.func @transform_1(%arg0: i32) -> (i32, i32) {
    %c0_i32 = arith.constant 0 : i32
    %c0_i32_0 = arith.constant 0 : i32
    %c0_i32_1 = arith.constant 0 : i32
    return %c0_i32, %c0_i32_0 : i32, i32
  }
  func.func @transform_2(%arg0: i32) -> (i32, i32) {
    %c0_i32 = arith.constant 0 : i32
    %c0_i32_0 = arith.constant 0 : i32
    %c0_i32_1 = arith.constant 0 : i32
    return %c0_i32, %c0_i32_0 : i32, i32
  }
  func.func @transform_3(%arg0: i32) -> (i32, i32, i32) {
    %c0_i32 = arith.constant 0 : i32
    %c0_i32_0 = arith.constant 0 : i32
    %c0_i32_1 = arith.constant 0 : i32
    return %arg0, %c0_i32, %c0_i32_0 : i32, i32, i32
  }
}

</mosaic_0001>

<llo_original>
// kernel: seg_model_forward.1
$region0: #{seg_model_forward.1}
  #allocation0 [shape = 'u32[]', space=smem, size = 0x4, offset = 0x4, fixed_abs, tag = 'smem constant byte address 0x4 - core index']
  #allocation1 [shape = 'u32[72,128]{1,0:T(1,128)}', space=vmem, size = 0x9000, scoped, tag = 'internal scratch']
  %s0 = inlined_call_operand.vmem [shape: f32[2,8,256], index: 0, kind: input, shape index: {}]
  %s1 = inlined_call_operand.vmem [shape: f32[88,257], index: 1, kind: input, shape index: {}]
  %s2 = inlined_call_operand.vmem [shape: f32[144,256], index: 2, kind: input, shape index: {}]
  %s3 = inlined_call_operand.vmem [shape: f32[2,8,256], index: 3, kind: output, shape index: {}]
  %s4 = sld [smem:[#allocation0]]
  $region45: #{seg_model_forward.1} parent=0
    _
  %s6 = ssub.s32 1, %s4
  %s7 = scalar_select 0, %s6, %s4
  loop: start=0, step=1, limit=4
  $region2: #{seg_model_forward.1} parent=0 // loop_pre_header
    _
  $region3: #{seg_model_forward.1} parent=0 // loop_header
    %s9 = sphi 0, %s13
    %p10 = scmp.ge.s32.totalorder %s9, 4
    %s19 = sphi 0, %s21
    %s22 = sphi 0, %s19
    %s23 = sphi 0, %s22
    %s39 = sphi 0, %s23
    %s43 = sphi 0, %s43
    %s45 = sphi 0, %s43
    %s46 = sphi 0, %s45
    %s60 = sphi 0, %s46
    %s64 = sphi 0, %s64
    %s66 = sphi 0, %s64
    %s67 = sphi 0, %s66
    %s81 = sphi 0, %s67
    %s87 = sphi 0, %s89
    %s90 = sphi 0, %s87
    %s91 = sphi 0, %s90
    %s107 = sphi 0, %s91
  $region4: #{seg_model_forward.1} parent=0 // loop_header_branch
    %12 = sbr.rel (%p10) target = $region8
  $region5: #{seg_model_forward.1} parent=0 // loop_body
    %s14 = ssub.s32 %s9, 1
    %s15 = ssub.s32 %s9, 2
    %s16 = sadd.s32 %s9, 1
    %s17 = ssub.s32 %s9, %s16
    %p18 = scmp.eq.s32.totalorder %s17, 0
    %s20 = sadd.s32 %s19, 1
    %s21 = scalar_select %p18, %s19, %s20
    %p24 = pneg %p18
    %p25 = scmp.eq.s32.totalorder %s9, 1
    %p26 = por %p24, %p25
    %p27 = scmp.ne.s32.totalorder %s19, %s22
    %p28 = scmp.eq.s32.totalorder %s9, 0
    %p29 = por %p27, %p28
    %p30 = scmp.ne.s32.totalorder %s19, %s22
    %p31 = scmp.eq.s32.totalorder %s14, 1
    %p32 = por %p30, %p31
    %p33 = scmp.ne.s32.totalorder %s22, %s23
    %p34 = scmp.eq.s32.totalorder %s14, 0
    %p35 = por %p33, %p34
    %p36 = scmp.ne.s32.totalorder %s22, %s23
    %p37 = scmp.eq.s32.totalorder %s15, 1
    %p38 = por %p36, %p37
    %p40 = scmp.ne.s32.totalorder %s23, %s39
    %p41 = scmp.eq.s32.totalorder %s15, 0
    %p42 = por %p40, %p41
    %s44 = sadd.s32 %s43, 1
    %p47 = scmp.eq.s32.totalorder %s9, 1
    %p48 = scmp.ne.s32.totalorder %s43, %s45
    %p49 = scmp.eq.s32.totalorder %s9, 0
    %p50 = por %p48, %p49
    %p51 = scmp.ne.s32.totalorder %s43, %s45
    %p52 = scmp.eq.s32.totalorder %s14, 1
    %p53 = por %p51, %p52
    %p54 = scmp.ne.s32.totalorder %s45, %s46
    %p55 = scmp.eq.s32.totalorder %s14, 0
    %p56 = por %p54, %p55
    %p57 = scmp.ne.s32.totalorder %s45, %s46
    %p58 = scmp.eq.s32.totalorder %s15, 1
    %p59 = por %p57, %p58
    %p61 = scmp.ne.s32.totalorder %s46, %s60
    %p62 = scmp.eq.s32.totalorder %s15, 0
    %p63 = por %p61, %p62
    %s65 = sadd.s32 %s64, 1
    %p68 = scmp.eq.s32.totalorder %s9, 1
    %p69 = scmp.ne.s32.totalorder %s64, %s66
    %p70 = scmp.eq.s32.totalorder %s9, 0
    %p71 = por %p69, %p70
    %p72 = scmp.ne.s32.totalorder %s64, %s66
    %p73 = scmp.eq.s32.totalorder %s14, 1
    %p74 = por %p72, %p73
    %p75 = scmp.ne.s32.totalorder %s66, %s67
    %p76 = scmp.eq.s32.totalorder %s14, 0
    %p77 = por %p75, %p76
    %p78 = scmp.ne.s32.totalorder %s66, %s67
    %p79 = scmp.eq.s32.totalorder %s15, 1
    %p80 = por %p78, %p79
    %p82 = scmp.ne.s32.totalorder %s67, %s81
    %p83 = scmp.eq.s32.totalorder %s15, 0
    %p84 = por %p82, %p83
    %s85 = ssub.s32 %s9, %s16
    %p86 = scmp.eq.s32.totalorder %s85, 0
    %s88 = sadd.s32 %s87, 1
    %s89 = scalar_select %p86, %s87, %s88
    %p92 = pneg %p86
    %p93 = scmp.eq.s32.totalorder %s9, 1
    %p94 = por %p92, %p93
    %p95 = scmp.ne.s32.totalorder %s87, %s90
    %p96 = scmp.eq.s32.totalorder %s9, 0
    %p97 = por %p95, %p96
    %p98 = scmp.ne.s32.totalorder %s87, %s90
    %p99 = scmp.eq.s32.totalorder %s14, 1
    %p100 = por %p98, %p99
    %p101 = scmp.ne.s32.totalorder %s90, %s91
    %p102 = scmp.eq.s32.totalorder %s14, 0
    %p103 = por %p101, %p102
    %p104 = scmp.ne.s32.totalorder %s90, %s91
    %p105 = scmp.eq.s32.totalorder %s15, 1
    %p106 = por %p104, %p105
    %p108 = scmp.ne.s32.totalorder %s91, %s107
    %p109 = scmp.eq.s32.totalorder %s15, 0
    %p110 = por %p108, %p109
    %p111 = scmp.le.s32.totalorder 1, %s9
    %p112 = scmp.lt.s32.totalorder %s9, 3
    %p113 = pnand %p111, %p112
    %p114 = pneg %p113
    // Predicated region
    $region9: #{seg_model_forward.1} parent=5 // pred_check
      _
    $region10: #{seg_model_forward.1} parent=5 // pred_check_branch
      %116 = sbr.rel (%p113) target = $region12
    $region11: #{seg_model_forward.1} parent=5 // pred_region
      %s117 = ssub.s32 %s9, 1
      // Predicated region
      $region13: #{seg_model_forward.1} parent=11 // pred_check
        %p118 = pneg %p56
      $region14: #{seg_model_forward.1} parent=11 // pred_check_branch
        %120 = sbr.rel (%p118) target = $region16
      $region15: #{seg_model_forward.1} parent=11 // pred_region
        _
      $region16: #{seg_model_forward.1} parent=11 // pred_fallthru
        _
      // Predicated region
      $region17: #{seg_model_forward.1} parent=11 // pred_check
        %p121 = pneg %p77
      $region18: #{seg_model_forward.1} parent=11 // pred_check_branch
        %123 = sbr.rel (%p121) target = $region20
      $region19: #{seg_model_forward.1} parent=11 // pred_region
        _
      $region20: #{seg_model_forward.1} parent=11 // pred_fallthru
        _
    $region12: #{seg_model_forward.1} parent=5 // pred_fallthru
      _
    %p124 = scmp.lt.s32.totalorder %s9, 2
    // Predicated region
    $region21: #{seg_model_forward.1} parent=5 // pred_check
      %p125 = pneg %p124
    $region22: #{seg_model_forward.1} parent=5 // pred_check_branch
      %127 = sbr.rel (%p125) target = $region24
    $region23: #{seg_model_forward.1} parent=5 // pred_region
      // Predicated region
      $region25: #{seg_model_forward.1} parent=23 // pred_check
        %p128 = pneg %p29
      $region26: #{seg_model_forward.1} parent=23 // pred_check_branch
        %130 = sbr.rel (%p128) target = $region28
      $region27: #{seg_model_forward.1} parent=23 // pred_region
        %p131 = scmp.lt.s32.totalorder %s9, 1
        %s132 = scalar_select %p131, %s9, 1
        %s133 = smul.addr %s132, 2
        %s134 = smul.addr %s133, 8
        %s135 = scalar_lea.vmem %s0, %s134
      $region28: #{seg_model_forward.1} parent=23 // pred_fallthru
        _
    $region24: #{seg_model_forward.1} parent=5 // pred_fallthru
      _
    %p136 = scmp.le.s32.totalorder 1, %s9
    %p137 = scmp.lt.s32.totalorder %s9, 3
    %p138 = pnand %p136, %p137
    %p139 = pneg %p138
    // Predicated region
    $region29: #{seg_model_forward.1} parent=5 // pred_check
      _
    $region30: #{seg_model_forward.1} parent=5 // pred_check_branch
      %141 = sbr.rel (%p138) target = $region32
    $region31: #{seg_model_forward.1} parent=5 // pred_region
      %s142 = ssub.s32 %s9, 1
      %p143 = scmp.lt.s32.totalorder %s14, 1
      %s144 = scalar_select %p143, %s14, 1
      %s145 = smul.addr %s144, 2
      %s146 = smul.addr %s145, 8
      %s147 = scalar_lea.vmem %s0, %s146
      %p148 = pneg %p35
      %p149 = pneg %p32
      %p150 = pneg %p56
      %p151 = pneg %p53
      %p152 = pneg %p77
      %p153 = pneg %p74
      %p154 = pneg %p103
      %p155 = pneg %p100
      %p156 = scmp.lt.s32.totalorder %s14, 1
      %s157 = scalar_select %p156, %s14, 1
      %s158 = smul.addr %s157, 2
      %s159 = smul.addr %s158, 8
      %s160 = scalar_lea.vmem %s3, %s159
      %p161 = scmp.lt.s32.totalorder %s14, 1
      %s162 = scalar_select %p161, %s14, 1
      %s163 = smul.addr %s162, 2
      %s164 = smul.addr %s163, 8
      %s165 = scalar_lea.vmem %s0, %s164
      %p166 = scmp.lt.s32.totalorder %s14, 1
      %s167 = scalar_select %p166, %s14, 1
      %s168 = smul.addr %s167, 2
      %s169 = smul.addr %s168, 8
      %s170 = scalar_lea.vmem %s3, %s169
      %v171 = vld [vmem:[%s165] sm:$0xff]
      %v172 = vld [vmem:[%s165 + $0x8] sm:$0xff]
      %173 = vrot.lane.b32.xlu0 %v171, 17
      %v174 = vpop.permute.xlu0 %173
      %175 = vrot.lane.b32.xlu0 %v172, 17
      %v176 = vpop.permute.xlu0 %175
      %v177 = vlaneseq
      %v178 = vand.u32 %v177, 127
      %vm179 = vcmp.lt.s32.totalorder %v178, 17
      %v180 = vsel %vm179, %v174, %v176
      %v181 = vsel %vm179, %v176, %v174
      %v182 = vld [vmem:[%s2] sm:$0xff]
      %v183 = vld [vmem:[%s2 + $0x8] sm:$0xff]
      %v184 = vmul.f32 %v181, %v182
      %v185 = vmul.f32 %v180, %v183
      %186 = vrot.lane.b32.xlu0 %v171, 16
      %v187 = vpop.permute.xlu0 %186
      %188 = vrot.lane.b32.xlu0 %v172, 16
      %v189 = vpop.permute.xlu0 %188
      %vm190 = vcmp.lt.s32.totalorder %v178, 16
      %v191 = vsel %vm190, %v187, %v189
      %v192 = vsel %vm190, %v189, %v187
      %v193 = vld [vmem:[%s2 + $0x20] sm:$0xff]
      %v194 = vld [vmem:[%s2 + $0x28] sm:$0xff]
      %v195 = vmul.f32 %v192, %v193
      %v196 = vmul.f32 %v191, %v194
      %197 = vrot.lane.b32.xlu0 %v171, 15
      %v198 = vpop.permute.xlu0 %197
      %199 = vrot.lane.b32.xlu0 %v172, 15
      %v200 = vpop.permute.xlu0 %199
      %vm201 = vcmp.lt.s32.totalorder %v178, 15
      %v202 = vsel %vm201, %v198, %v200
      %v203 = vsel %vm201, %v200, %v198
      %v204 = vld [vmem:[%s2 + $0x40] sm:$0xff]
      %v205 = vld [vmem:[%s2 + $0x48] sm:$0xff]
      %v206 = vmul.f32 %v203, %v204
      %v207 = vmul.f32 %v202, %v205
      %208 = vrot.lane.b32.xlu0 %v171, 1
      %v209 = vpop.permute.xlu0 %208
      %210 = vrot.lane.b32.xlu0 %v172, 1
      %v211 = vpop.permute.xlu0 %210
      %vm212 = vcmp.lt.s32.totalorder %v178, 1
      %v213 = vsel %vm212, %v209, %v211
      %v214 = vsel %vm212, %v211, %v209
      %v215 = vld [vmem:[%s2 + $0x60] sm:$0xff]
      %v216 = vld [vmem:[%s2 + $0x68] sm:$0xff]
      %v217 = vmul.f32 %v214, %v215
      %v218 = vmul.f32 %v213, %v216
      %v219 = vld [vmem:[%s2 + $0x80] sm:$0xff]
      %v220 = vld [vmem:[%s2 + $0x88] sm:$0xff]
      %v221 = vmul.f32 %v171, %v219
      %v222 = vmul.f32 %v172, %v220
      %223 = vrot.lane.b32.xlu0 %v171, 127
      %v224 = vpop.permute.xlu0 %223
      %225 = vrot.lane.b32.xlu0 %v172, 127
      %v226 = vpop.permute.xlu0 %225
      %vm227 = vcmp.lt.s32.totalorder %v178, 127
      %v228 = vsel %vm227, %v224, %v226
      %v229 = vsel %vm227, %v226, %v224
      %v230 = vld [vmem:[%s2 + $0xa0] sm:$0xff]
      %v231 = vld [vmem:[%s2 + $0xa8] sm:$0xff]
      %v232 = vmul.f32 %v228, %v230
      %v233 = vmul.f32 %v229, %v231
      %234 = vrot.lane.b32.xlu0 %v171, 113
      %v235 = vpop.permute.xlu0 %234
      %236 = vrot.lane.b32.xlu0 %v172, 113
      %v237 = vpop.permute.xlu0 %236
      %vm238 = vcmp.lt.s32.totalorder %v178, 113
      %v239 = vsel %vm238, %v235, %v237
      %v240 = vsel %vm238, %v237, %v235
      %v241 = vld [vmem:[%s2 + $0xc0] sm:$0xff]
      %v242 = vld [vmem:[%s2 + $0xc8] sm:$0xff]
      %v243 = vmul.f32 %v239, %v241
      %v244 = vmul.f32 %v240, %v242
      %245 = vrot.lane.b32.xlu0 %v171, 112
      %v246 = vpop.permute.xlu0 %245
      %247 = vrot.lane.b32.xlu0 %v172, 112
      %v248 = vpop.permute.xlu0 %247
      %vm249 = vcmp.lt.s32.totalorder %v178, 112
      %v250 = vsel %vm249, %v246, %v248
      %v251 = vsel %vm249, %v248, %v246
      %v252 = vld [vmem:[%s2 + $0xe0] sm:$0xff]
      %v253 = vld [vmem:[%s2 + $0xe8] sm:$0xff]
      %v254 = vmul.f32 %v250, %v252
      %v255 = vmul.f32 %v251, %v253
      %256 = vrot.lane.b32.xlu0 %v171, 111
      %v257 = vpop.permute.xlu0 %256
      %258 = vrot.lane.b32.xlu0 %v172, 111
      %v259 = vpop.permute.xlu0 %258
      %vm260 = vcmp.lt.s32.totalorder %v178, 111
      %v261 = vsel %vm260, %v257, %v259
      %v262 = vsel %vm260, %v259, %v257
      %v263 = vld [vmem:[%s2 + $0x100] sm:$0xff]
      %v264 = vld [vmem:[%s2 + $0x108] sm:$0xff]
      %v265 = vmul.f32 %v261, %v263
      %v266 = vmul.f32 %v262, %v264
      %v267 = vld [vmem:[%s1] sm:$0xff]
      %v268 = vld [vmem:[%s1 + $0x18] sm:$0xff]
      %v269 = vld [vmem:[%s1 + $0x10] sm:$0xff]
      %v270 = vld [vmem:[%s1 + $0x28] sm:$0xff]
      %272 = vset.pattern.permute.xlu0 0
      %273 = vperm.xlu0 %272, %v269
      %v274 = vpop.permute.xlu0 %273
      %277 = vset.pattern.permute.xlu0 0
      %278 = vperm.xlu0 %277, %v270
      %v279 = vpop.permute.xlu0 %278
      %vm281 = vcmask 588800
      %v283 = vsel %vm281, %v267, 0
      %v286 = vsel %vm281, %v268, 0
      %288 = vmatpush.msra.mxu0 0.0
      %289 = vmatpush.msra.mxu0 0.0
      %290 = vmatpush.msra.mxu0 0.0
      %291 = vmatpush.msra.mxu0 0.0
      %292 = vmatpush.msra.mxu0 0.0
      %293 = vmatpush.msra.mxu0 0.0
      %294 = vmatpush.msra.mxu0 0.0
      %295 = vmatpush.msra.mxu0 %v265
      %296 = vmatpush.msra.mxu0 %v254
      %297 = vmatpush.msra.mxu0 %v243
      %298 = vmatpush.msra.mxu0 %v232
      %299 = vmatpush.msra.mxu0 %v221
      %300 = vmatpush.msra.mxu0 %v217
      %301 = vmatpush.msra.mxu0 %v206
      %302 = vmatpush.msra.mxu0 %v195
      %303 = vmatpush.msra.mxu0 %v184
      %304 = vmatmul.f32.gmra.mxu0 %v283
      %v305 = vpop.f32.mrf.mxu0
      %v306 = vadd.f32 %v274, %v305
      %307 = vmatmul.f32.gmra.mxu0 %v286
      %v308 = vpop.f32.mrf.mxu0
      %v309 = vadd.f32 %v279, %v308
      %310 = vdwg.mxu0
      %311 = vmatpush.msra.mxu0 0.0
      %312 = vmatpush.msra.mxu0 0.0
      %313 = vmatpush.msra.mxu0 0.0
      %314 = vmatpush.msra.mxu0 0.0
      %315 = vmatpush.msra.mxu0 0.0
      %316 = vmatpush.msra.mxu0 0.0
      %317 = vmatpush.msra.mxu0 0.0
      %318 = vmatpush.msra.mxu0 %v266
      %319 = vmatpush.msra.mxu0 %v255
      %320 = vmatpush.msra.mxu0 %v244
      %321 = vmatpush.msra.mxu0 %v233
      %322 = vmatpush.msra.mxu0 %v222
      %323 = vmatpush.msra.mxu0 %v218
      %324 = vmatpush.msra.mxu0 %v207
      %325 = vmatpush.msra.mxu0 %v196
      %326 = vmatpush.msra.mxu0 %v185
      %327 = vmatmul.f32.gmra.mxu0 %v283
      %v328 = vpop.f32.mrf.mxu0
      %v329 = vadd.f32 %v274, %v328
      %330 = vmatmul.f32.gmra.mxu0 %v286
      %v331 = vpop.f32.mrf.mxu0
      %v332 = vadd.f32 %v279, %v331
      %333 = vdwg.mxu0
      %v334 = vmax.f32 %v306, 0.0
      %v335 = vmax.f32 %v329, 0.0
      %v336 = vmax.f32 %v309, 0.0
      %v337 = vmax.f32 %v332, 0.0
      %338 = vrot.lane.b32.xlu0 %v334, 17
      %v339 = vpop.permute.xlu0 %338
      %340 = vrot.lane.b32.xlu0 %v336, 17
      %v341 = vpop.permute.xlu0 %340
      %342 = vrot.lane.b32.xlu0 %v335, 17
      %v343 = vpop.permute.xlu0 %342
      %344 = vrot.lane.b32.xlu0 %v337, 17
      %v345 = vpop.permute.xlu0 %344
      %v346 = vsel %vm179, %v339, %v343
      %v347 = vsel %vm179, %v341, %v345
      %v348 = vsel %vm179, %v343, %v339
      %v349 = vsel %vm179, %v345, %v341
      %v350 = vld [vmem:[%s2] sm:$0xff]
      %v351 = vld [vmem:[%s2 + $0x8] sm:$0xff]
      %v352 = vld [vmem:[%s2 + $0x10] sm:$0xff]
      %v353 = vld [vmem:[%s2 + $0x18] sm:$0xff]
      %v354 = vmul.f32 %v348, %v350
      %v355 = vmul.f32 %v346, %v351
      %v356 = vmul.f32 %v349, %v352
      %v357 = vmul.f32 %v347, %v353
      %358 = vrot.lane.b32.xlu0 %v334, 16
      %v359 = vpop.permute.xlu0 %358
      %360 = vrot.lane.b32.xlu0 %v336, 16
      %v361 = vpop.permute.xlu0 %360
      %362 = vrot.lane.b32.xlu0 %v335, 16
      %v363 = vpop.permute.xlu0 %362
      %364 = vrot.lane.b32.xlu0 %v337, 16
      %v365 = vpop.permute.xlu0 %364
      %v366 = vsel %vm190, %v359, %v363
      %v367 = vsel %vm190, %v361, %v365
      %v368 = vsel %vm190, %v363, %v359
      %v369 = vsel %vm190, %v365, %v361
      %v370 = vld [vmem:[%s2 + $0x20] sm:$0xff]
      %v371 = vld [vmem:[%s2 + $0x28] sm:$0xff]
      %v372 = vld [vmem:[%s2 + $0x30] sm:$0xff]
      %v373 = vld [vmem:[%s2 + $0x38] sm:$0xff]
      %v374 = vmul.f32 %v368, %v370
      %v375 = vmul.f32 %v366, %v371
      %v376 = vmul.f32 %v369, %v372
      %v377 = vmul.f32 %v367, %v373
      %378 = vrot.lane.b32.xlu0 %v334, 15
      %v379 = vpop.permute.xlu0 %378
      %380 = vrot.lane.b32.xlu0 %v336, 15
      %v381 = vpop.permute.xlu0 %380
      %382 = vrot.lane.b32.xlu0 %v335, 15
      %v383 = vpop.permute.xlu0 %382
      %384 = vrot.lane.b32.xlu0 %v337, 15
      %v385 = vpop.permute.xlu0 %384
      %v386 = vsel %vm201, %v379, %v383
      %v387 = vsel %vm201, %v381, %v385
      %v388 = vsel %vm201, %v383, %v379
      %v389 = vsel %vm201, %v385, %v381
      %v390 = vld [vmem:[%s2 + $0x40] sm:$0xff]
      %v391 = vld [vmem:[%s2 + $0x48] sm:$0xff]
      %v392 = vld [vmem:[%s2 + $0x50] sm:$0xff]
      %v393 = vld [vmem:[%s2 + $0x58] sm:$0xff]
      %v394 = vmul.f32 %v388, %v390
      %v395 = vmul.f32 %v386, %v391
      %v396 = vmul.f32 %v389, %v392
      %v397 = vmul.f32 %v387, %v393
      %398 = vrot.lane.b32.xlu0 %v334, 1
      %v399 = vpop.permute.xlu0 %398
      %400 = vrot.lane.b32.xlu0 %v336, 1
      %v401 = vpop.permute.xlu0 %400
      %402 = vrot.lane.b32.xlu0 %v335, 1
      %v403 = vpop.permute.xlu0 %402
      %404 = vrot.lane.b32.xlu0 %v337, 1
      %v405 = vpop.permute.xlu0 %404
      %v406 = vsel %vm212, %v399, %v403
      %v407 = vsel %vm212, %v401, %v405
      %v408 = vsel %vm212, %v403, %v399
      %v409 = vsel %vm212, %v405, %v401
      %v410 = vld [vmem:[%s2 + $0x60] sm:$0xff]
      %v411 = vld [vmem:[%s2 + $0x68] sm:$0xff]
      %v412 = vld [vmem:[%s2 + $0x70] sm:$0xff]
      %v413 = vld [vmem:[%s2 + $0x78] sm:$0xff]
      %v414 = vmul.f32 %v408, %v410
      %v415 = vmul.f32 %v406, %v411
      %v416 = vmul.f32 %v409, %v412
      %v417 = vmul.f32 %v407, %v413
      %v418 = vld [vmem:[%s2 + $0x80] sm:$0xff]
      %v419 = vld [vmem:[%s2 + $0x88] sm:$0xff]
      %v420 = vld [vmem:[%s2 + $0x90] sm:$0xff]
      %v421 = vld [vmem:[%s2 + $0x98] sm:$0xff]
      %v422 = vmul.f32 %v334, %v418
      %v423 = vmul.f32 %v335, %v419
      %v424 = vmul.f32 %v336, %v420
      %v425 = vmul.f32 %v337, %v421
      %426 = vrot.lane.b32.xlu0 %v334, 127
      %v427 = vpop.permute.xlu0 %426
      %428 = vrot.lane.b32.xlu0 %v336, 127
      %v429 = vpop.permute.xlu0 %428
      %430 = vrot.lane.b32.xlu0 %v335, 127
      %v431 = vpop.permute.xlu0 %430
      %432 = vrot.lane.b32.xlu0 %v337, 127
      %v433 = vpop.permute.xlu0 %432
      %v434 = vsel %vm227, %v427, %v431
      %v435 = vsel %vm227, %v429, %v433
      %v436 = vsel %vm227, %v431, %v427
      %v437 = vsel %vm227, %v433, %v429
      %v438 = vld [vmem:[%s2 + $0xa0] sm:$0xff]
      %v439 = vld [vmem:[%s2 + $0xa8] sm:$0xff]
      %v440 = vld [vmem:[%s2 + $0xb0] sm:$0xff]
      %v441 = vld [vmem:[%s2 + $0xb8] sm:$0xff]
      %v442 = vmul.f32 %v434, %v438
      %v443 = vmul.f32 %v436, %v439
      %v444 = vmul.f32 %v435, %v440
      %v445 = vmul.f32 %v437, %v441
      %446 = vrot.lane.b32.xlu0 %v334, 113
      %v447 = vpop.permute.xlu0 %446
      %448 = vrot.lane.b32.xlu0 %v336, 113
      %v449 = vpop.permute.xlu0 %448
      %450 = vrot.lane.b32.xlu0 %v335, 113
      %v451 = vpop.permute.xlu0 %450
      %452 = vrot.lane.b32.xlu0 %v337, 113
      %v453 = vpop.permute.xlu0 %452
      %v454 = vsel %vm238, %v447, %v451
      %v455 = vsel %vm238, %v449, %v453
      %v456 = vsel %vm238, %v451, %v447
      %v457 = vsel %vm238, %v453, %v449
      %v458 = vld [vmem:[%s2 + $0xc0] sm:$0xff]
      %v459 = vld [vmem:[%s2 + $0xc8] sm:$0xff]
      %v460 = vld [vmem:[%s2 + $0xd0] sm:$0xff]
      %v461 = vld [vmem:[%s2 + $0xd8] sm:$0xff]
      %v462 = vmul.f32 %v454, %v458
      %v463 = vmul.f32 %v456, %v459
      %v464 = vmul.f32 %v455, %v460
      %v465 = vmul.f32 %v457, %v461
      %466 = vrot.lane.b32.xlu0 %v334, 112
      %v467 = vpop.permute.xlu0 %466
      %468 = vrot.lane.b32.xlu0 %v336, 112
      %v469 = vpop.permute.xlu0 %468
      %470 = vrot.lane.b32.xlu0 %v335, 112
      %v471 = vpop.permute.xlu0 %470
      %472 = vrot.lane.b32.xlu0 %v337, 112
      %v473 = vpop.permute.xlu0 %472
      %v474 = vsel %vm249, %v467, %v471
      %v475 = vsel %vm249, %v469, %v473
      %v476 = vsel %vm249, %v471, %v467
      %v477 = vsel %vm249, %v473, %v469
      %v478 = vld [vmem:[%s2 + $0xe0] sm:$0xff]
      %v479 = vld [vmem:[%s2 + $0xe8] sm:$0xff]
      %v480 = vld [vmem:[%s2 + $0xf0] sm:$0xff]
      %v481 = vld [vmem:[%s2 + $0xf8] sm:$0xff]
      %v482 = vmul.f32 %v474, %v478
      %v483 = vmul.f32 %v476, %v479
      %v484 = vmul.f32 %v475, %v480
      %v485 = vmul.f32 %v477, %v481
      %486 = vrot.lane.b32.xlu0 %v334, 111
      %v487 = vpop.permute.xlu0 %486
      %488 = vrot.lane.b32.xlu0 %v336, 111
      %v489 = vpop.permute.xlu0 %488
      %490 = vrot.lane.b32.xlu0 %v335, 111
      %v491 = vpop.permute.xlu0 %490
      %492 = vrot.lane.b32.xlu0 %v337, 111
      %v493 = vpop.permute.xlu0 %492
      %v494 = vsel %vm260, %v487, %v491
      %v495 = vsel %vm260, %v489, %v493
      %v496 = vsel %vm260, %v491, %v487
      %v497 = vsel %vm260, %v493, %v489
      %v498 = vld [vmem:[%s2 + $0x100] sm:$0xff]
      %v499 = vld [vmem:[%s2 + $0x108] sm:$0xff]
      %v500 = vld [vmem:[%s2 + $0x110] sm:$0xff]
      %v501 = vld [vmem:[%s2 + $0x118] sm:$0xff]
      %v502 = vmul.f32 %v494, %v498
      %v503 = vmul.f32 %v496, %v499
      %v504 = vmul.f32 %v495, %v500
      %v505 = vmul.f32 %v497, %v501
      %v506 = vld [vmem:[%s1 + $0x30] sm:$0xff]
      %v507 = vld [vmem:[%s1 + $0x38] sm:$0xff]
      %v508 = vld [vmem:[%s1 + $0x48] sm:$0xff]
      %v509 = vld [vmem:[%s1 + $0x50] sm:$0xff]
      %v510 = vld [vmem:[%s1 + $0x60] sm:$0xff]
      %v511 = vld [vmem:[%s1 + $0x68] sm:$0xff]
      %v512 = vld [vmem:[%s1 + $0x78] sm:$0xff]
      %v513 = vld [vmem:[%s1 + $0x80] sm:$0xff]
      %v514 = vld [vmem:[%s1 + $0x40] sm:$0xff]
      %v515 = vld [vmem:[%s1 + $0x58] sm:$0xff]
      %v516 = vld [vmem:[%s1 + $0x70] sm:$0xff]
      %v517 = vld [vmem:[%s1 + $0x88] sm:$0xff]
      %519 = vset.pattern.permute.xlu0 0
      %520 = vperm.xlu0 %519, %v514
      %v521 = vpop.permute.xlu0 %520
      %524 = vset.pattern.permute.xlu0 0
      %525 = vperm.xlu0 %524, %v515
      %v526 = vpop.permute.xlu0 %525
      %529 = vset.pattern.permute.xlu0 0
      %530 = vperm.xlu0 %529, %v516
      %v531 = vpop.permute.xlu0 %530
      %534 = vset.pattern.permute.xlu0 0
      %535 = vperm.xlu0 %534, %v517
      %v536 = vpop.permute.xlu0 %535
      %vm538 = vcmask 130048
      %v540 = vsel %vm538, %v507, 0
      %v543 = vsel %vm538, %v509, 0
      %v546 = vsel %vm538, %v511, 0
      %v549 = vsel %vm538, %v513, 0
      %551 = vmatpush.msra.mxu0 %v484
      %552 = vmatpush.msra.mxu0 %v482
      %553 = vmatpush.msra.mxu0 %v464
      %554 = vmatpush.msra.mxu0 %v462
      %555 = vmatpush.msra.mxu0 %v444
      %556 = vmatpush.msra.mxu0 %v442
      %557 = vmatpush.msra.mxu0 %v424
      %558 = vmatpush.msra.mxu0 %v422
      %559 = vmatpush.msra.mxu0 %v416
      %560 = vmatpush.msra.mxu0 %v414
      %561 = vmatpush.msra.mxu0 %v396
      %562 = vmatpush.msra.mxu0 %v394
      %563 = vmatpush.msra.mxu0 %v376
      %564 = vmatpush.msra.mxu0 %v374
      %565 = vmatpush.msra.mxu0 %v356
      %566 = vmatpush.msra.mxu0 %v354
      %567 = vmatmul.f32.gmra.mxu0 %v506
      %v568 = vpop.f32.mrf.mxu0
      %v569 = vadd.f32 %v521, %v568
      %570 = vmatmul.f32.gmra.mxu0 %v508
      %v571 = vpop.f32.mrf.mxu0
      %v572 = vadd.f32 %v526, %v571
      %573 = vmatmul.f32.gmra.mxu0 %v510
      %v574 = vpop.f32.mrf.mxu0
      %v575 = vadd.f32 %v531, %v574
      %576 = vmatmul.f32.gmra.mxu0 %v512
      %v577 = vpop.f32.mrf.mxu0
      %v578 = vadd.f32 %v536, %v577
      %579 = vdwg.mxu0
      %580 = vmatpush.msra.mxu0 0.0
      %581 = vmatpush.msra.mxu0 0.0
      %582 = vmatpush.msra.mxu0 0.0
      %583 = vmatpush.msra.mxu0 0.0
      %584 = vmatpush.msra.mxu0 0.0
      %585 = vmatpush.msra.mxu0 0.0
      %586 = vmatpush.msra.mxu0 0.0
      %587 = vmatpush.msra.mxu0 0.0
      %588 = vmatpush.msra.mxu0 0.0
      %589 = vmatpush.msra.mxu0 0.0
      %590 = vmatpush.msra.mxu0 0.0
      %591 = vmatpush.msra.mxu0 0.0
      %592 = vmatpush.msra.mxu0 0.0
      %593 = vmatpush.msra.mxu0 0.0
      %594 = vmatpush.msra.mxu0 %v504
      %595 = vmatpush.msra.mxu0 %v502
      %596 = vmatmul.f32.gmra.mxu0 %v540
      %v597 = vpop.f32.mrf.mxu0
      %v598 = vadd.f32 %v569, %v597
      %599 = vmatmul.f32.gmra.mxu0 %v543
      %v600 = vpop.f32.mrf.mxu0
      %v601 = vadd.f32 %v572, %v600
      %602 = vmatmul.f32.gmra.mxu0 %v546
      %v603 = vpop.f32.mrf.mxu0
      %v604 = vadd.f32 %v575, %v603
      %605 = vmatmul.f32.gmra.mxu0 %v549
      %v606 = vpop.f32.mrf.mxu0
      %v607 = vadd.f32 %v578, %v606
      %608 = vdwg.mxu0
      %609 = vmatpush.msra.mxu0 %v485
      %610 = vmatpush.msra.mxu0 %v483
      %611 = vmatpush.msra.mxu0 %v465
      %612 = vmatpush.msra.mxu0 %v463
      %613 = vmatpush.msra.mxu0 %v445
      %614 = vmatpush.msra.mxu0 %v443
      %615 = vmatpush.msra.mxu0 %v425
      %616 = vmatpush.msra.mxu0 %v423
      %617 = vmatpush.msra.mxu0 %v417
      %618 = vmatpush.msra.mxu0 %v415
      %619 = vmatpush.msra.mxu0 %v397
      %620 = vmatpush.msra.mxu0 %v395
      %621 = vmatpush.msra.mxu0 %v377
      %622 = vmatpush.msra.mxu0 %v375
      %623 = vmatpush.msra.mxu0 %v357
      %624 = vmatpush.msra.mxu0 %v355
      %625 = vmatmul.f32.gmra.mxu0 %v506
      %v626 = vpop.f32.mrf.mxu0
      %v627 = vadd.f32 %v521, %v626
      %628 = vmatmul.f32.gmra.mxu0 %v508
      %v629 = vpop.f32.mrf.mxu0
      %v630 = vadd.f32 %v526, %v629
      %631 = vmatmul.f32.gmra.mxu0 %v510
      %v632 = vpop.f32.mrf.mxu0
      %v633 = vadd.f32 %v531, %v632
      %634 = vmatmul.f32.gmra.mxu0 %v512
      %v635 = vpop.f32.mrf.mxu0
      %v636 = vadd.f32 %v536, %v635
      %637 = vdwg.mxu0
      %638 = vmatpush.msra.mxu0 0.0
      %639 = vmatpush.msra.mxu0 0.0
      %640 = vmatpush.msra.mxu0 0.0
      %641 = vmatpush.msra.mxu0 0.0
      %642 = vmatpush.msra.mxu0 0.0
      %643 = vmatpush.msra.mxu0 0.0
      %644 = vmatpush.msra.mxu0 0.0
      %645 = vmatpush.msra.mxu0 0.0
      %646 = vmatpush.msra.mxu0 0.0
      %647 = vmatpush.msra.mxu0 0.0
      %648 = vmatpush.msra.mxu0 0.0
      %649 = vmatpush.msra.mxu0 0.0
      %650 = vmatpush.msra.mxu0 0.0
      %651 = vmatpush.msra.mxu0 0.0
      %652 = vmatpush.msra.mxu0 %v505
      %653 = vmatpush.msra.mxu0 %v503
      %654 = vmatmul.f32.gmra.mxu0 %v540
      %v655 = vpop.f32.mrf.mxu0
      %v656 = vadd.f32 %v627, %v655
      %657 = vmatmul.f32.gmra.mxu0 %v543
      %v658 = vpop.f32.mrf.mxu0
      %v659 = vadd.f32 %v630, %v658
      %660 = vmatmul.f32.gmra.mxu0 %v546
      %v661 = vpop.f32.mrf.mxu0
      %v662 = vadd.f32 %v633, %v661
      %663 = vmatmul.f32.gmra.mxu0 %v549
      %v664 = vpop.f32.mrf.mxu0
      %v665 = vadd.f32 %v636, %v664
      %666 = vdwg.mxu0
      %v667 = vmax.f32 %v598, 0.0
      %v668 = vmax.f32 %v656, 0.0
      %v669 = vmax.f32 %v601, 0.0
      %v670 = vmax.f32 %v659, 0.0
      %v671 = vmax.f32 %v604, 0.0
      %v672 = vmax.f32 %v662, 0.0
      %v673 = vmax.f32 %v607, 0.0
      %v674 = vmax.f32 %v665, 0.0
      %v675 = vld [vmem:[%s1 + $0x90] sm:$0xff]
      %v676 = vld [vmem:[%s1 + $0xa8] sm:$0xff]
      %v677 = vld [vmem:[%s1 + $0xc0] sm:$0xff]
      %v678 = vld [vmem:[%s1 + $0xd8] sm:$0xff]
      %v679 = vld [vmem:[%s1 + $0xa0] sm:$0xff]
      %v680 = vld [vmem:[%s1 + $0xb8] sm:$0xff]
      %v681 = vld [vmem:[%s1 + $0xd0] sm:$0xff]
      %v682 = vld [vmem:[%s1 + $0xe8] sm:$0xff]
      %684 = vset.pattern.permute.xlu0 0
      %685 = vperm.xlu0 %684, %v679
      %v686 = vpop.permute.xlu0 %685
      %689 = vset.pattern.permute.xlu0 0
      %690 = vperm.xlu0 %689, %v680
      %v691 = vpop.permute.xlu0 %690
      %694 = vset.pattern.permute.xlu0 0
      %695 = vperm.xlu0 %694, %v681
      %v696 = vpop.permute.xlu0 %695
      %699 = vset.pattern.permute.xlu0 0
      %700 = vperm.xlu0 %699, %v682
      %v701 = vpop.permute.xlu0 %700
      %vm703 = vcmask 261120
      %v705 = vsel %vm703, %v675, 0
      %v708 = vsel %vm703, %v676, 0
      %v711 = vsel %vm703, %v677, 0
      %v714 = vsel %vm703, %v678, 0
      %716 = vmatpush.msra.mxu0 0.0
      %717 = vmatpush.msra.mxu0 0.0
      %718 = vmatpush.msra.mxu0 0.0
      %719 = vmatpush.msra.mxu0 0.0
      %720 = vmatpush.msra.mxu0 0.0
      %721 = vmatpush.msra.mxu0 0.0
      %722 = vmatpush.msra.mxu0 0.0
      %723 = vmatpush.msra.mxu0 0.0
      %724 = vmatpush.msra.mxu0 0.0
      %725 = vmatpush.msra.mxu0 0.0
      %726 = vmatpush.msra.mxu0 0.0
      %727 = vmatpush.msra.mxu0 0.0
      %728 = vmatpush.msra.mxu0 %v673
      %729 = vmatpush.msra.mxu0 %v671
      %730 = vmatpush.msra.mxu0 %v669
      %731 = vmatpush.msra.mxu0 %v667
      %732 = vmatmul.f32.gmra.mxu0 %v705
      %v733 = vpop.f32.mrf.mxu0
      %v734 = vadd.f32 %v686, %v733
      %735 = vmatmul.f32.gmra.mxu0 %v708
      %v736 = vpop.f32.mrf.mxu0
      %v737 = vadd.f32 %v691, %v736
      %738 = vmatmul.f32.gmra.mxu0 %v711
      %v739 = vpop.f32.mrf.mxu0
      %v740 = vadd.f32 %v696, %v739
      %741 = vmatmul.f32.gmra.mxu0 %v714
      %v742 = vpop.f32.mrf.mxu0
      %v743 = vadd.f32 %v701, %v742
      %744 = vdwg.mxu0
      %745 = vmatpush.msra.mxu0 0.0
      %746 = vmatpush.msra.mxu0 0.0
      %747 = vmatpush.msra.mxu0 0.0
      %748 = vmatpush.msra.mxu0 0.0
      %749 = vmatpush.msra.mxu0 0.0
      %750 = vmatpush.msra.mxu0 0.0
      %751 = vmatpush.msra.mxu0 0.0
      %752 = vmatpush.msra.mxu0 0.0
      %753 = vmatpush.msra.mxu0 0.0
      %754 = vmatpush.msra.mxu0 0.0
      %755 = vmatpush.msra.mxu0 0.0
      %756 = vmatpush.msra.mxu0 0.0
      %757 = vmatpush.msra.mxu0 %v674
      %758 = vmatpush.msra.mxu0 %v672
      %759 = vmatpush.msra.mxu0 %v670
      %760 = vmatpush.msra.mxu0 %v668
      %761 = vmatmul.f32.gmra.mxu0 %v705
      %v762 = vpop.f32.mrf.mxu0
      %v763 = vadd.f32 %v686, %v762
      %764 = vmatmul.f32.gmra.mxu0 %v708
      %v765 = vpop.f32.mrf.mxu0
      %v766 = vadd.f32 %v691, %v765
      %767 = vmatmul.f32.gmra.mxu0 %v711
      %v768 = vpop.f32.mrf.mxu0
      %v769 = vadd.f32 %v696, %v768
      %770 = vmatmul.f32.gmra.mxu0 %v714
      %v771 = vpop.f32.mrf.mxu0
      %v772 = vadd.f32 %v701, %v771
      %773 = vdwg.mxu0
      %v774 = vmax.f32 %v734, 0.0
      %v775 = vmax.f32 %v763, 0.0
      %v776 = vmax.f32 %v737, 0.0
      %v777 = vmax.f32 %v766, 0.0
      %v778 = vmax.f32 %v740, 0.0
      %v779 = vmax.f32 %v769, 0.0
      %v780 = vmax.f32 %v743, 0.0
      %v781 = vmax.f32 %v772, 0.0
      %v782 = vld [vmem:[%s1 + $0xf0] sm:$0xff]
      %v783 = vld [vmem:[%s1 + $0x100] sm:$0xff]
      %785 = vset.pattern.permute.xlu0 0
      %786 = vperm.xlu0 %785, %v783
      %v787 = vpop.permute.xlu0 %786
      %v790 = vsel %vm703, %v782, 0
      %792 = vmatpush.msra.mxu0 0.0
      %793 = vmatpush.msra.mxu0 0.0
      %794 = vmatpush.msra.mxu0 0.0
      %795 = vmatpush.msra.mxu0 0.0
      %796 = vmatpush.msra.mxu0 0.0
      %797 = vmatpush.msra.mxu0 0.0
      %798 = vmatpush.msra.mxu0 0.0
      %799 = vmatpush.msra.mxu0 0.0
      %800 = vmatpush.msra.mxu0 0.0
      %801 = vmatpush.msra.mxu0 0.0
      %802 = vmatpush.msra.mxu0 0.0
      %803 = vmatpush.msra.mxu0 0.0
      %804 = vmatpush.msra.mxu0 %v780
      %805 = vmatpush.msra.mxu0 %v778
      %806 = vmatpush.msra.mxu0 %v776
      %807 = vmatpush.msra.mxu0 %v774
      %808 = vmatmul.f32.gmra.mxu0 %v790
      %v809 = vpop.f32.mrf.mxu0
      %v810 = vadd.f32 %v787, %v809
      %811 = vdwg.mxu0
      %812 = vmatpush.msra.mxu0 0.0
      %813 = vmatpush.msra.mxu0 0.0
      %814 = vmatpush.msra.mxu0 0.0
      %815 = vmatpush.msra.mxu0 0.0
      %816 = vmatpush.msra.mxu0 0.0
      %817 = vmatpush.msra.mxu0 0.0
      %818 = vmatpush.msra.mxu0 0.0
      %819 = vmatpush.msra.mxu0 0.0
      %820 = vmatpush.msra.mxu0 0.0
      %821 = vmatpush.msra.mxu0 0.0
      %822 = vmatpush.msra.mxu0 0.0
      %823 = vmatpush.msra.mxu0 0.0
      %824 = vmatpush.msra.mxu0 %v781
      %825 = vmatpush.msra.mxu0 %v779
      %826 = vmatpush.msra.mxu0 %v777
      %827 = vmatpush.msra.mxu0 %v775
      %828 = vmatmul.f32.gmra.mxu0 %v790
      %v829 = vpop.f32.mrf.mxu0
      %v830 = vadd.f32 %v787, %v829
      %831 = vdwg.mxu0
      %832 = vst [vmem:[%s170] sm:$0xff] %v810
      %833 = vst [vmem:[%s170 + $0x8] sm:$0xff] %v830
      %p834 = scmp.lt.s32.totalorder %s14, 1
      %s835 = scalar_select %p834, %s14, 1
      %s836 = smul.addr %s835, 2
      %s837 = smul.addr %s836, 8
      %s838 = scalar_lea.vmem %s3, %s837
      // Predicated region
      $region33: #{seg_model_forward.1} parent=31 // pred_check
        %p839 = pneg %p100
      $region34: #{seg_model_forward.1} parent=31 // pred_check_branch
        %841 = sbr.rel (%p839) target = $region36
      $region35: #{seg_model_forward.1} parent=31 // pred_region
        _
      $region36: #{seg_model_forward.1} parent=31 // pred_fallthru
        _
    $region32: #{seg_model_forward.1} parent=5 // pred_fallthru
      _
    %p842 = scmp.le.s32.totalorder 2, %s9
    // Predicated region
    $region37: #{seg_model_forward.1} parent=5 // pred_check
      %p843 = pneg %p842
    $region38: #{seg_model_forward.1} parent=5 // pred_check_branch
      %845 = sbr.rel (%p843) target = $region40
    $region39: #{seg_model_forward.1} parent=5 // pred_region
      %s846 = ssub.s32 %s9, 2
      // Predicated region
      $region41: #{seg_model_forward.1} parent=39 // pred_check
        %p847 = pneg %p106
      $region42: #{seg_model_forward.1} parent=39 // pred_check_branch
        %849 = sbr.rel (%p847) target = $region44
      $region43: #{seg_model_forward.1} parent=39 // pred_region
        %p850 = scmp.lt.s32.totalorder %s15, 1
        %s851 = scalar_select %p850, %s15, 1
        %s852 = smul.addr %s851, 2
        %s853 = smul.addr %s852, 8
        %s854 = scalar_lea.vmem %s3, %s853
      $region44: #{seg_model_forward.1} parent=39 // pred_fallthru
        _
    $region40: #{seg_model_forward.1} parent=5 // pred_fallthru
      _
  $region6: #{seg_model_forward.1} parent=0 // loop_footer
    %s13 = sadd.s32 1, %s9
  $region7: #{seg_model_forward.1} parent=0 // loop_footer_branch
    %8 = sbr.rel target = $region3
  $region8: #{seg_model_forward.1} parent=0 // loop_exit
    _

</llo_original>
